<compile_context>
chip_gen: v7x
topology: tpu7x:2x2x1
jax: 0.10.0
libtpu: 0.0.40
codegen_flags: <defaults>
</compile_context>

<pallas_src>
import jax
import jax.numpy as jnp
from jax import lax
from jax.experimental import pallas as pl
from jax.experimental.pallas import tpu as pltpu


# ----------------------------- model hyper-params -----------------------------
BATCH = 8
INPUT_DIM = 32          # V_emb / V_hidden feature dim (== hidden_dim of MaskBlock)
REDUCTION_RATIO = 1
MASK_HIDDEN = int(INPUT_DIM * REDUCTION_RATIO)   # aggregation dim of mask_layer
NUM_BLOCKS = 2
BLOCK_DIM = 16
HIDDEN_UNITS = [32]     # MLPLayers hidden units
OUTPUT_DIM = 8
LN_EPS = 1e-5           # nn.LayerNorm default
MATMUL_DTYPE = jnp.bfloat16   # MXU input dtype (fp32 accumulation in-kernel)
DEFAULT_TILE_B = 2048   # batch rows per grid step (multiple of 8)
# dropout_rates = 0  -> no Dropout layers (forward is deterministic)


def _round_up(x, m):
    return (x + m - 1) // m * m


def _block_diag(w):
    """(num_blocks, din, dout) -> block-diagonal (num_blocks*din, num_blocks*dout)."""
    nb, din, dout = w.shape
    eye = jnp.eye(nb, dtype=w.dtype)
    return (eye[:, None, :, None] * w[:, :, None, :]).reshape(nb * din, nb * dout)


# --------------------------------- the kernel ---------------------------------
def _masknet_kernel(v_emb_ref, v_hid_ref,
                    w1_ref, b1_ref, w2_ref, b2_ref,        # stacked mask_layer
                    w3_ref, gamma_ref, beta_ref, avg2_ref,  # hidden_layer + LN
                    wd1_ref, bd1_ref, wd2_ref, bd2_ref,     # DNN (MLPLayers)
                    out_ref):
    f32 = jnp.float32
    mm_dt = w1_ref.dtype
    nbd = NUM_BLOCKS * BLOCK_DIM

    v_emb = v_emb_ref[...].astype(mm_dt)          # (Tb, D)   cast in-kernel
    v_hid = v_hid_ref[...]                        # (Tb, D)   f32

    # ---- mask_layer for all blocks: Linear -> ReLU -> Linear (block-diag) ----
    h = jnp.dot(v_emb, w1_ref[...], preferred_element_type=f32) + b1_ref[...]
    h = jnp.maximum(h, 0.0)                       # (Tb, NB*MH)  f32
    v_mask = jnp.dot(h.astype(mm_dt), w2_ref[...],
                     preferred_element_type=f32) + b2_ref[...]   # (Tb, NB*D)

    # ---- instance-guided mask (fp32); v_hidden replicated across blocks ----
    v_hid_rep = jnp.concatenate([v_hid] * NUM_BLOCKS, axis=-1)   # (Tb, NB*D)
    masked = v_mask * v_hid_rep                   # (Tb, NB*D)   f32

    # ---- hidden_layer: Linear(no bias, block-diag) -> per-block LayerNorm -> ReLU
    z = jnp.dot(masked.astype(mm_dt), w3_ref[...],
                preferred_element_type=f32)       # (Tb, NB*BD)  f32
    # Fused per-block stats: [z | z*z] @ avg2 -> [mean | E[z^2]] in one matmul.
    stats_in = jnp.concatenate([z, z * z], axis=-1)               # (Tb, 2*NB*BD)
    stats = jnp.dot(stats_in, avg2_ref[...],
                    preferred_element_type=f32,
                    precision=lax.Precision.HIGHEST)
    mean = stats[:, :nbd]
    var = stats[:, nbd:] - mean * mean
    scale = gamma_ref[...] * lax.rsqrt(var + LN_EPS)              # gamma folded
    concat_out = jnp.maximum((z - mean) * scale + beta_ref[...], 0.0)

    # ---- DNN (MLPLayers, ReLU after every Linear, dropout=0) ----
    h1 = jnp.dot(concat_out.astype(mm_dt), wd1_ref[...],
                 preferred_element_type=f32) + bd1_ref[...]
    h1 = jnp.maximum(h1, 0.0)
    out = jnp.dot(h1.astype(mm_dt), wd2_ref[...],
                  preferred_element_type=f32) + bd2_ref[...]      # (Tb, OUT)
    out_ref[...] = jnp.maximum(out, 0.0).astype(out_ref.dtype)


# --------------------------------- the wrapper ---------------------------------
def parallel_masknet_forward(v_emb, v_hidden, params, *, tile_b=DEFAULT_TILE_B):
    B, D = v_emb.shape
    nb = NUM_BLOCKS

    # ---- restructure parameters (trace-time; tiny, constant-folded by XLA) ----
    w1s = jnp.transpose(params["w1"], (1, 0, 2)).reshape(D, nb * MASK_HIDDEN)
    b1s = params["b1"].reshape(1, nb * MASK_HIDDEN)
    w2bd = _block_diag(params["w2"])                       # (nb*MH, nb*D)
    b2s = params["b2"].reshape(1, nb * D)
    w3bd = _block_diag(params["w3"])                       # (nb*D, nb*BD)
    gam = params["gamma"].reshape(1, nb * BLOCK_DIM)
    bet = params["beta"].reshape(1, nb * BLOCK_DIM)
    # Doubled block-diag averaging matrix for the fused [mean | E[z^2]] matmul.
    avg2 = _block_diag(jnp.full((2 * nb, BLOCK_DIM, BLOCK_DIM),
                                1.0 / BLOCK_DIM, jnp.float32))   # (2*nb*BD, 2*nb*BD)

    wd1 = params["wd1"]
    bd1 = params["bd1"].reshape(1, -1)
    wd2 = params["wd2"]                                    # true (h1, OUTPUT_DIM)
    bd2 = params["bd2"].reshape(1, -1)

    # bf16 matmul operands (fp32 accumulation inside the kernel).
    w1s, w2bd, w3bd, wd1c, wd2c = (x.astype(MATMUL_DTYPE)
                                   for x in (w1s, w2bd, w3bd, wd1, wd2))

    # ---- batch tiling: grid over batch, ragged last block handled by Pallas ----
    tile_b = max(8, min(int(tile_b), _round_up(B, 8)))
    if B > 8 and tile_b >= _round_up(B, 8):
        # Ensure >= 2 grid steps so the "parallel" axis can feed both v7x TCs.
        tile_b = max(8, _round_up((B + 1) // 2, 8))
    grid = (pl.cdiv(B, tile_b),)

    args = (v_emb, v_hidden,
            w1s, b1s, w2bd, b2s,
            w3bd, gam, bet, avg2,
            wd1c, bd1, wd2c, bd2)

    weight_specs = [pl.BlockSpec(a.shape, lambda i: (0, 0)) for a in args[2:]]
    in_specs = [pl.BlockSpec((tile_b, D), lambda i: (i, 0)),
                pl.BlockSpec((tile_b, D), lambda i: (i, 0))] + weight_specs

    out = pl.pallas_call(
        _masknet_kernel,
        grid=grid,
        in_specs=in_specs,
        out_specs=pl.BlockSpec((tile_b, OUTPUT_DIM), lambda i: (i, 0)),
        out_shape=jax.ShapeDtypeStruct((B, OUTPUT_DIM), jnp.float32),
        compiler_params=pltpu.CompilerParams(
            dimension_semantics=("parallel",),
            vmem_limit_bytes=32 * 1024 * 1024),
    )(*args)

    return out


# ------------------------------ pure-JAX reference -----------------------------
def reference_forward(v_emb, v_hidden, p):
    outs = []
    for b in range(NUM_BLOCKS):
        h = jnp.maximum(v_emb @ p["w1"][b] + p["b1"][b], 0.0)
        v_mask = h @ p["w2"][b] + p["b2"][b]
        masked = v_mask * v_hidden
        z = masked @ p["w3"][b]
        mean = z.mean(-1, keepdims=True)
        var = ((z - mean) ** 2).mean(-1, keepdims=True)
        zn = (z - mean) / jnp.sqrt(var + LN_EPS) * p["gamma"][b] + p["beta"][b]
        outs.append(jnp.maximum(zn, 0.0))
    concat = jnp.concatenate(outs, axis=-1)
    h1 = jnp.maximum(concat @ p["wd1"] + p["bd1"], 0.0)
    return jnp.maximum(h1 @ p["wd2"] + p["bd2"], 0.0)


# --------------------------- deterministic init ---------------------------
def _xavier_normal(key, fan_in, fan_out, shape):
    std = (2.0 / (fan_in + fan_out)) ** 0.5
    return std * jax.random.normal(key, shape, dtype=jnp.float32)


def make_params(key):
    ks = jax.random.split(key, 8)
    dnn_in = NUM_BLOCKS * BLOCK_DIM
    h1 = HIDDEN_UNITS[0]
    return {
        # mask_layer: Linear(D, MASK_HIDDEN) -> ReLU -> Linear(MASK_HIDDEN, D)
        "w1": _xavier_normal(ks[0], INPUT_DIM, MASK_HIDDEN,
                             (NUM_BLOCKS, INPUT_DIM, MASK_HIDDEN)),
        "b1": jnp.zeros((NUM_BLOCKS, 1, MASK_HIDDEN), jnp.float32),
        "w2": _xavier_normal(ks[1], MASK_HIDDEN, INPUT_DIM,
                             (NUM_BLOCKS, MASK_HIDDEN, INPUT_DIM)),
        "b2": jnp.zeros((NUM_BLOCKS, 1, INPUT_DIM), jnp.float32),
        # hidden_layer: Linear(D, BLOCK_DIM, bias=False) -> LayerNorm -> ReLU
        "w3": _xavier_normal(ks[2], INPUT_DIM, BLOCK_DIM,
                             (NUM_BLOCKS, INPUT_DIM, BLOCK_DIM)),
        "gamma": jnp.ones((NUM_BLOCKS, 1, BLOCK_DIM), jnp.float32),
        "beta": jnp.zeros((NUM_BLOCKS, 1, BLOCK_DIM), jnp.float32),
        # DNN: [dnn_in] + HIDDEN_UNITS + [OUTPUT_DIM], ReLU after each Linear
        "wd1": _xavier_normal(ks[3], dnn_in, h1, (dnn_in, h1)),
        "bd1": jnp.zeros((1, h1), jnp.float32),
        "wd2": _xavier_normal(ks[4], h1, OUTPUT_DIM, (h1, OUTPUT_DIM)),
        "bd2": jnp.zeros((1, OUTPUT_DIM), jnp.float32),
    }


if __name__ == "__main__":
    key = jax.random.PRNGKey(0)
    k_emb, k_hid, k_par = jax.random.split(key, 3)

    v_emb = jax.random.normal(k_emb, (BATCH, INPUT_DIM), dtype=jnp.float32)
    v_hidden = jax.random.normal(k_hid, (BATCH, INPUT_DIM), dtype=jnp.float32)
    params = make_params(k_par)

    # Small-shape check (single grid step).
    out = jax.block_until_ready(parallel_masknet_forward(v_emb, v_hidden, params))
    ref = reference_forward(v_emb, v_hidden, params)
    assert out.shape == (BATCH, OUTPUT_DIM)
    # bf16 matmul inputs vs fp32 reference -> bf16-level tolerance.
    assert jnp.allclose(out, ref, atol=5e-2, rtol=5e-2), \
        float(jnp.max(jnp.abs(out - ref)))

    # Gridded batch path: default tile selection (>=2 grid steps, no ragged).
    B2 = 1040
    kb1, kb2 = jax.random.split(jax.random.PRNGKey(1))
    v_emb2 = jax.random.normal(kb1, (B2, INPUT_DIM), dtype=jnp.float32)
    v_hid2 = jax.random.normal(kb2, (B2, INPUT_DIM), dtype=jnp.float32)
    ref2 = reference_forward(v_emb2, v_hid2, params)

    out2 = jax.block_until_ready(parallel_masknet_forward(v_emb2, v_hid2, params))
    assert out2.shape == (B2, OUTPUT_DIM)
    assert jnp.allclose(out2, ref2, atol=5e-2, rtol=5e-2), \
        float(jnp.max(jnp.abs(out2 - ref2)))

    # Explicit tile_b=512: exercises the ragged (masked) last block path.
    out3 = jax.block_until_ready(
        parallel_masknet_forward(v_emb2, v_hid2, params, tile_b=512))
    assert out3.shape == (B2, OUTPUT_DIM)
    assert jnp.allclose(out3, ref2, atol=5e-2, rtol=5e-2), \
        float(jnp.max(jnp.abs(out3 - ref2)))

    print("KERNEL_OK")
</pallas_src>

<mosaic_0001>
module attributes {stable_mosaic.version = 11 : i64} {
  func.func @_masknet_kernel(%arg0: i32, %arg1: memref<8x32xf32, #tpu.memory_space<vmem>>, %arg2: memref<8x32xf32, #tpu.memory_space<vmem>>, %arg3: memref<32x64xbf16, #tpu.memory_space<vmem>>, %arg4: memref<1x64xf32, #tpu.memory_space<vmem>>, %arg5: memref<64x64xbf16, #tpu.memory_space<vmem>>, %arg6: memref<1x64xf32, #tpu.memory_space<vmem>>, %arg7: memref<64x32xbf16, #tpu.memory_space<vmem>>, %arg8: memref<1x32xf32, #tpu.memory_space<vmem>>, %arg9: memref<1x32xf32, #tpu.memory_space<vmem>>, %arg10: memref<64x64xf32, #tpu.memory_space<vmem>>, %arg11: memref<32x32xbf16, #tpu.memory_space<vmem>>, %arg12: memref<1x32xf32, #tpu.memory_space<vmem>>, %arg13: memref<32x8xbf16, #tpu.memory_space<vmem>>, %arg14: memref<1x8xf32, #tpu.memory_space<vmem>>, %arg15: memref<8x8xf32, #tpu.memory_space<vmem>>) attributes {dimension_semantics = [#tpu.dimension_semantics<parallel>], iteration_bounds = array<i64: 1>, scalar_prefetch = 0 : i64, scratch_operands = 0 : i64, tpu.core_type = #tpu.core_type<tc>, window_params = [{transform_indices = @transform_0, window_bounds = array<i64: 8, 32>}, {transform_indices = @transform_1, window_bounds = array<i64: 8, 32>}, {pipeline_mode = #tpu.pipeline_mode<synchronous>, transform_indices = @transform_2, window_bounds = array<i64: 32, 64>}, {pipeline_mode = #tpu.pipeline_mode<synchronous>, transform_indices = @transform_3, window_bounds = array<i64: 1, 64>}, {pipeline_mode = #tpu.pipeline_mode<synchronous>, transform_indices = @transform_4, window_bounds = array<i64: 64, 64>}, {pipeline_mode = #tpu.pipeline_mode<synchronous>, transform_indices = @transform_5, window_bounds = array<i64: 1, 64>}, {pipeline_mode = #tpu.pipeline_mode<synchronous>, transform_indices = @transform_6, window_bounds = array<i64: 64, 32>}, {pipeline_mode = #tpu.pipeline_mode<synchronous>, transform_indices = @transform_7, window_bounds = array<i64: 1, 32>}, {pipeline_mode = #tpu.pipeline_mode<synchronous>, transform_indices = @transform_8, window_bounds = array<i64: 1, 32>}, {pipeline_mode = #tpu.pipeline_mode<synchronous>, transform_indices = @transform_9, window_bounds = array<i64: 64, 64>}, {pipeline_mode = #tpu.pipeline_mode<synchronous>, transform_indices = @transform_10, window_bounds = array<i64: 32, 32>}, {pipeline_mode = #tpu.pipeline_mode<synchronous>, transform_indices = @transform_11, window_bounds = array<i64: 1, 32>}, {pipeline_mode = #tpu.pipeline_mode<synchronous>, transform_indices = @transform_12, window_bounds = array<i64: 32, 8>}, {pipeline_mode = #tpu.pipeline_mode<synchronous>, transform_indices = @transform_13, window_bounds = array<i64: 1, 8>}, {transform_indices = @transform_14, window_bounds = array<i64: 8, 8>}]} {
    %c0 = arith.constant 0 : index
    %c0_0 = arith.constant 0 : index
    %0 = vector.load %arg1[%c0, %c0_0] : memref<8x32xf32, #tpu.memory_space<vmem>>, vector<8x32xf32>
    %1 = arith.truncf %0 : vector<8x32xf32> to vector<8x32xbf16>
    %c0_1 = arith.constant 0 : index
    %c0_2 = arith.constant 0 : index
    %2 = vector.load %arg2[%c0_1, %c0_2] : memref<8x32xf32, #tpu.memory_space<vmem>>, vector<8x32xf32>
    %c0_3 = arith.constant 0 : index
    %c0_4 = arith.constant 0 : index
    %3 = vector.load %arg3[%c0_3, %c0_4] : memref<32x64xbf16, #tpu.memory_space<vmem>>, vector<32x64xbf16>
    %cst = arith.constant dense<0.000000e+00> : vector<8x64xf32>
    %4 = tpu.matmul %1, %3, %cst {dimension_numbers = #tpu.dot_dimension_numbers<[1], [0], [0], [1], [0, 0, 1, 1], [], []>} : vector<8x32xbf16>, vector<32x64xbf16>, vector<8x64xf32> -> vector<8x64xf32>
    %c0_5 = arith.constant 0 : index
    %c0_6 = arith.constant 0 : index
    %5 = vector.load %arg4[%c0_5, %c0_6] : memref<1x64xf32, #tpu.memory_space<vmem>>, vector<1x64xf32>
    %6 = vector.broadcast %5 : vector<1x64xf32> to vector<8x64xf32>
    %7 = arith.addf %4, %6 : vector<8x64xf32>
    %cst_7 = arith.constant 0.000000e+00 : f32
    %8 = vector.broadcast %cst_7 : f32 to vector<8x64xf32>
    %9 = arith.maximumf %7, %8 : vector<8x64xf32>
    %10 = arith.truncf %9 : vector<8x64xf32> to vector<8x64xbf16>
    %c0_8 = arith.constant 0 : index
    %c0_9 = arith.constant 0 : index
    %11 = vector.load %arg5[%c0_8, %c0_9] : memref<64x64xbf16, #tpu.memory_space<vmem>>, vector<64x64xbf16>
    %cst_10 = arith.constant dense<0.000000e+00> : vector<8x64xf32>
    %12 = tpu.matmul %10, %11, %cst_10 {dimension_numbers = #tpu.dot_dimension_numbers<[1], [0], [0], [1], [0, 0, 1, 1], [], []>} : vector<8x64xbf16>, vector<64x64xbf16>, vector<8x64xf32> -> vector<8x64xf32>
    %c0_11 = arith.constant 0 : index
    %c0_12 = arith.constant 0 : index
    %13 = vector.load %arg6[%c0_11, %c0_12] : memref<1x64xf32, #tpu.memory_space<vmem>>, vector<1x64xf32>
    %14 = vector.broadcast %13 : vector<1x64xf32> to vector<8x64xf32>
    %15 = arith.addf %12, %14 : vector<8x64xf32>
    %16 = tpu.concatenate %2, %2 in 1 : vector<8x32xf32>, vector<8x32xf32> -> vector<8x64xf32>
    %17 = arith.mulf %15, %16 : vector<8x64xf32>
    %18 = arith.truncf %17 : vector<8x64xf32> to vector<8x64xbf16>
    %c0_13 = arith.constant 0 : index
    %c0_14 = arith.constant 0 : index
    %19 = vector.load %arg7[%c0_13, %c0_14] : memref<64x32xbf16, #tpu.memory_space<vmem>>, vector<64x32xbf16>
    %cst_15 = arith.constant dense<0.000000e+00> : vector<8x32xf32>
    %20 = tpu.matmul %18, %19, %cst_15 {dimension_numbers = #tpu.dot_dimension_numbers<[1], [0], [0], [1], [0, 0, 1, 1], [], []>} : vector<8x64xbf16>, vector<64x32xbf16>, vector<8x32xf32> -> vector<8x32xf32>
    %21 = arith.mulf %20, %20 : vector<8x32xf32>
    %22 = tpu.concatenate %20, %21 in 1 : vector<8x32xf32>, vector<8x32xf32> -> vector<8x64xf32>
    %c0_16 = arith.constant 0 : index
    %c0_17 = arith.constant 0 : index
    %23 = vector.load %arg10[%c0_16, %c0_17] : memref<64x64xf32, #tpu.memory_space<vmem>>, vector<64x64xf32>
    %cst_18 = arith.constant dense<0.000000e+00> : vector<8x64xf32>
    %24 = tpu.matmul %22, %23, %cst_18 {dimension_numbers = #tpu.dot_dimension_numbers<[1], [0], [0], [1], [0, 0, 1, 1], [], []>, precision = #tpu.contract_precision<fp32>} : vector<8x64xf32>, vector<64x64xf32>, vector<8x64xf32> -> vector<8x64xf32>
    %25 = vector.extract_strided_slice %24 {offsets = [0, 0], sizes = [8, 32], strides = [1, 1]} : vector<8x64xf32> to vector<8x32xf32>
    %26 = vector.extract_strided_slice %24 {offsets = [0, 32], sizes = [8, 32], strides = [1, 1]} : vector<8x64xf32> to vector<8x32xf32>
    %27 = arith.mulf %25, %25 : vector<8x32xf32>
    %28 = arith.subf %26, %27 : vector<8x32xf32>
    %c0_19 = arith.constant 0 : index
    %c0_20 = arith.constant 0 : index
    %29 = vector.load %arg8[%c0_19, %c0_20] : memref<1x32xf32, #tpu.memory_space<vmem>>, vector<1x32xf32>
    %cst_21 = arith.constant 9.99999974E-6 : f32
    %30 = vector.broadcast %cst_21 : f32 to vector<8x32xf32>
    %31 = arith.addf %28, %30 : vector<8x32xf32>
    %32 = math.rsqrt %31 : vector<8x32xf32>
    %33 = vector.broadcast %29 : vector<1x32xf32> to vector<8x32xf32>
    %34 = arith.mulf %33, %32 : vector<8x32xf32>
    %35 = arith.subf %20, %25 : vector<8x32xf32>
    %36 = arith.mulf %35, %34 : vector<8x32xf32>
    %c0_22 = arith.constant 0 : index
    %c0_23 = arith.constant 0 : index
    %37 = vector.load %arg9[%c0_22, %c0_23] : memref<1x32xf32, #tpu.memory_space<vmem>>, vector<1x32xf32>
    %38 = vector.broadcast %37 : vector<1x32xf32> to vector<8x32xf32>
    %39 = arith.addf %36, %38 : vector<8x32xf32>
    %cst_24 = arith.constant 0.000000e+00 : f32
    %40 = vector.broadcast %cst_24 : f32 to vector<8x32xf32>
    %41 = arith.maximumf %39, %40 : vector<8x32xf32>
    %42 = arith.truncf %41 : vector<8x32xf32> to vector<8x32xbf16>
    %c0_25 = arith.constant 0 : index
    %c0_26 = arith.constant 0 : index
    %43 = vector.load %arg11[%c0_25, %c0_26] : memref<32x32xbf16, #tpu.memory_space<vmem>>, vector<32x32xbf16>
    %cst_27 = arith.constant dense<0.000000e+00> : vector<8x32xf32>
    %44 = tpu.matmul %42, %43, %cst_27 {dimension_numbers = #tpu.dot_dimension_numbers<[1], [0], [0], [1], [0, 0, 1, 1], [], []>} : vector<8x32xbf16>, vector<32x32xbf16>, vector<8x32xf32> -> vector<8x32xf32>
    %c0_28 = arith.constant 0 : index
    %c0_29 = arith.constant 0 : index
    %45 = vector.load %arg12[%c0_28, %c0_29] : memref<1x32xf32, #tpu.memory_space<vmem>>, vector<1x32xf32>
    %46 = vector.broadcast %45 : vector<1x32xf32> to vector<8x32xf32>
    %47 = arith.addf %44, %46 : vector<8x32xf32>
    %cst_30 = arith.constant 0.000000e+00 : f32
    %48 = vector.broadcast %cst_30 : f32 to vector<8x32xf32>
    %49 = arith.maximumf %47, %48 : vector<8x32xf32>
    %50 = arith.truncf %49 : vector<8x32xf32> to vector<8x32xbf16>
    %c0_31 = arith.constant 0 : index
    %c0_32 = arith.constant 0 : index
    %51 = vector.load %arg13[%c0_31, %c0_32] : memref<32x8xbf16, #tpu.memory_space<vmem>>, vector<32x8xbf16>
    %cst_33 = arith.constant dense<0.000000e+00> : vector<8x8xf32>
    %52 = tpu.matmul %50, %51, %cst_33 {dimension_numbers = #tpu.dot_dimension_numbers<[1], [0], [0], [1], [0, 0, 1, 1], [], []>} : vector<8x32xbf16>, vector<32x8xbf16>, vector<8x8xf32> -> vector<8x8xf32>
    %c0_34 = arith.constant 0 : index
    %c0_35 = arith.constant 0 : index
    %53 = vector.load %arg14[%c0_34, %c0_35] : memref<1x8xf32, #tpu.memory_space<vmem>>, vector<1x8xf32>
    %54 = vector.broadcast %53 : vector<1x8xf32> to vector<8x8xf32>
    %55 = arith.addf %52, %54 : vector<8x8xf32>
    %cst_36 = arith.constant 0.000000e+00 : f32
    %56 = vector.broadcast %cst_36 : f32 to vector<8x8xf32>
    %57 = arith.maximumf %55, %56 : vector<8x8xf32>
    %c0_37 = arith.constant 0 : index
    %c0_38 = arith.constant 0 : index
    %58 = vector.load %arg15[%c0_37, %c0_38] : memref<8x8xf32, #tpu.memory_space<vmem>>, vector<8x8xf32>
    tpu.vector_store %arg15[%c0_37, %c0_38], %57 {strides = array<i32>} : memref<8x8xf32, #tpu.memory_space<vmem>>, vector<8x8xf32>,
    return
  }
  func.func @transform_0(%arg0: i32) -> (i32, i32) {
    %c0_i32 = arith.constant 0 : i32
    %c0_i32_0 = arith.constant 0 : i32
    return %arg0, %c0_i32 : i32, i32
  }
  func.func @transform_1(%arg0: i32) -> (i32, i32) {
    %c0_i32 = arith.constant 0 : i32
    %c0_i32_0 = arith.constant 0 : i32
    return %arg0, %c0_i32 : i32, i32
  }
  func.func @transform_2(%arg0: i32) -> (i32, i32) {
    %c0_i32 = arith.constant 0 : i32
    %c0_i32_0 = arith.constant 0 : i32
    %c0_i32_1 = arith.constant 0 : i32
    return %c0_i32, %c0_i32_0 : i32, i32
  }
  func.func @transform_3(%arg0: i32) -> (i32, i32) {
    %c0_i32 = arith.constant 0 : i32
    %c0_i32_0 = arith.constant 0 : i32
    %c0_i32_1 = arith.constant 0 : i32
    return %c0_i32, %c0_i32_0 : i32, i32
  }
  func.func @transform_4(%arg0: i32) -> (i32, i32) {
    %c0_i32 = arith.constant 0 : i32
    %c0_i32_0 = arith.constant 0 : i32
    %c0_i32_1 = arith.constant 0 : i32
    return %c0_i32, %c0_i32_0 : i32, i32
  }
  func.func @transform_5(%arg0: i32) -> (i32, i32) {
    %c0_i32 = arith.constant 0 : i32
    %c0_i32_0 = arith.constant 0 : i32
    %c0_i32_1 = arith.constant 0 : i32
    return %c0_i32, %c0_i32_0 : i32, i32
  }
  func.func @transform_6(%arg0: i32) -> (i32, i32) {
    %c0_i32 = arith.constant 0 : i32
    %c0_i32_0 = arith.constant 0 : i32
    %c0_i32_1 = arith.constant 0 : i32
    return %c0_i32, %c0_i32_0 : i32, i32
  }
  func.func @transform_7(%arg0: i32) -> (i32, i32) {
    %c0_i32 = arith.constant 0 : i32
    %c0_i32_0 = arith.constant 0 : i32
    %c0_i32_1 = arith.constant 0 : i32
    return %c0_i32, %c0_i32_0 : i32, i32
  }
  func.func @transform_8(%arg0: i32) -> (i32, i32) {
    %c0_i32 = arith.constant 0 : i32
    %c0_i32_0 = arith.constant 0 : i32
    %c0_i32_1 = arith.constant 0 : i32
    return %c0_i32, %c0_i32_0 : i32, i32
  }
  func.func @transform_9(%arg0: i32) -> (i32, i32) {
    %c0_i32 = arith.constant 0 : i32
    %c0_i32_0 = arith.constant 0 : i32
    %c0_i32_1 = arith.constant 0 : i32
    return %c0_i32, %c0_i32_0 : i32, i32
  }
  func.func @transform_10(%arg0: i32) -> (i32, i32) {
    %c0_i32 = arith.constant 0 : i32
    %c0_i32_0 = arith.constant 0 : i32
    %c0_i32_1 = arith.constant 0 : i32
    return %c0_i32, %c0_i32_0 : i32, i32
  }
  func.func @transform_11(%arg0: i32) -> (i32, i32) {
    %c0_i32 = arith.constant 0 : i32
    %c0_i32_0 = arith.constant 0 : i32
    %c0_i32_1 = arith.constant 0 : i32
    return %c0_i32, %c0_i32_0 : i32, i32
  }
  func.func @transform_12(%arg0: i32) -> (i32, i32) {
    %c0_i32 = arith.constant 0 : i32
    %c0_i32_0 = arith.constant 0 : i32
    %c0_i32_1 = arith.constant 0 : i32
    return %c0_i32, %c0_i32_0 : i32, i32
  }
  func.func @transform_13(%arg0: i32) -> (i32, i32) {
    %c0_i32 = arith.constant 0 : i32
    %c0_i32_0 = arith.constant 0 : i32
    %c0_i32_1 = arith.constant 0 : i32
    return %c0_i32, %c0_i32_0 : i32, i32
  }
  func.func @transform_14(%arg0: i32) -> (i32, i32) {
    %c0_i32 = arith.constant 0 : i32
    %c0_i32_0 = arith.constant 0 : i32
    return %arg0, %c0_i32 : i32, i32
  }
}

</mosaic_0001>

<llo_original>
// kernel: tpu_custom_call.1
$region0: #{tpu_custom_call.1}
  #allocation0 [shape = 'u32[]', space=smem, size = 0x4, offset = 0x4, fixed_abs, tag = 'smem constant byte address 0x4 - core index']
  #allocation1 [shape = 'u32[144,128]{1,0:T(1,128)}', space=vmem, size = 0x12000, scoped, tag = 'internal scratch']
  %s0 = inlined_call_operand.hbm [shape: f32[8,32], index: 0, kind: input, shape index: {}]
  %s1 = inlined_call_operand.hbm [shape: f32[8,32], index: 1, kind: input, shape index: {}]
  %s2 = inlined_call_operand.hbm [shape: bf16[32,64], index: 2, kind: input, shape index: {}]
  %s3 = inlined_call_operand.vmem [shape: f32[1,64], index: 3, kind: input, shape index: {}]
  %s4 = inlined_call_operand.vmem [shape: bf16[64,64], index: 4, kind: input, shape index: {}]
  %s5 = inlined_call_operand.vmem [shape: f32[1,64], index: 5, kind: input, shape index: {}]
  %s6 = inlined_call_operand.vmem [shape: bf16[64,32], index: 6, kind: input, shape index: {}]
  %s7 = inlined_call_operand.vmem [shape: f32[1,32], index: 7, kind: input, shape index: {}]
  %s8 = inlined_call_operand.vmem [shape: f32[1,32], index: 8, kind: input, shape index: {}]
  %s9 = inlined_call_operand.vmem [shape: f32[64,64], index: 9, kind: input, shape index: {}]
  %s10 = inlined_call_operand.hbm [shape: bf16[32,32], index: 10, kind: input, shape index: {}]
  %s11 = inlined_call_operand.vmem [shape: f32[1,32], index: 11, kind: input, shape index: {}]
  %s12 = inlined_call_operand.vmem [shape: bf16[32,8], index: 12, kind: input, shape index: {}]
  %s13 = inlined_call_operand.vmem [shape: f32[1,8], index: 13, kind: input, shape index: {}]
  %s14 = inlined_call_operand.hbm [shape: f32[8,8], index: 14, kind: output, shape index: {}]
  %s15 = sld [smem:[#allocation0]]
  $region82: #{tpu_custom_call.1} parent=0
    _
  %s17 = ssub.s32 1, %s15
  %s18 = scalar_select 0, %s17, %s15
  $region1: #{tpu_custom_call.1} parent=0
    #allocation2 [shape = 'u8[4096]{0}', space=vmem, size = 0x1000, scoped, tag = 'input window, operand 0, single buffered']
    #allocation3 [shape = 's32[1]{0}', space=sflag, size = 0x4, scoped, tag = 'scoped memory for tpu_custom_call.1']
    #allocation4 [shape = 's32[1]{0}', space=sflag, size = 0x4, scoped, tag = 'scoped memory for tpu_custom_call.1']
    #allocation5 [shape = 'u8[4096]{0}', space=vmem, size = 0x1000, scoped, tag = 'input window, operand 1, single buffered']
    #allocation6 [shape = 's32[1]{0}', space=sflag, size = 0x4, scoped, tag = 'scoped memory for tpu_custom_call.1']
    #allocation7 [shape = 'u8[8192]{0}', space=vmem, size = 0x2000, scoped, tag = 'input window, operand 2, single buffered']
    #allocation8 [shape = 'u8[8192]{0}', space=vmem, size = 0x2000, scoped, tag = 'input window, operand 10, single buffered']
    #allocation9 [shape = 's32[1]{0}', space=sflag, size = 0x4, scoped, tag = 'scoped memory for tpu_custom_call.1']
    #allocation10 [shape = 'u8[4096]{0}', space=vmem, size = 0x1000, scoped, tag = 'output window, operand 0, single buffered']
    %19 = vsyncpa [#allocation3], 0
    %20 = vsyncpa [#allocation6], 0
    %21 = vsyncpa [#allocation9], 0
    %22 = vsyncpa [#allocation4], 0
    // Predicated region
    $region2: #{tpu_custom_call.1} parent=1 // pred_check
      _
    $region3: #{tpu_custom_call.1} parent=1 // pred_check_branch
      %24 = sbr.rel (0) target = $region5
    $region4: #{tpu_custom_call.1} parent=1 // pred_region
      %s26 = ssub.s32 128, 128
      %27 = vsyncadd [#allocation3], %s26
      %s29 = sshll.u32 [#allocation2], 4
      %s30 = int_to_ptr.vmem [resolvable:$true] %s29
      %32 = dma.hbm_to_vmem [thread:$0]  %s0, 128, %s30, [#allocation3]
    $region5: #{tpu_custom_call.1} parent=1 // pred_fallthru
      _
    // Predicated region
    $region6: #{tpu_custom_call.1} parent=1 // pred_check
      _
    $region7: #{tpu_custom_call.1} parent=1 // pred_check_branch
      %34 = sbr.rel (0) target = $region9
    $region8: #{tpu_custom_call.1} parent=1 // pred_region
      %s36 = ssub.s32 128, 128
      %37 = vsyncadd [#allocation6], %s36
      %s39 = sshll.u32 [#allocation5], 4
      %s40 = int_to_ptr.vmem [resolvable:$true] %s39
      %42 = dma.hbm_to_vmem [thread:$0]  %s1, 128, %s40, [#allocation6]
    $region9: #{tpu_custom_call.1} parent=1 // pred_fallthru
      _
    // Predicated region
    $region10: #{tpu_custom_call.1} parent=1 // pred_check
      _
    $region11: #{tpu_custom_call.1} parent=1 // pred_check_branch
      %44 = sbr.rel (0) target = $region13
    $region12: #{tpu_custom_call.1} parent=1 // pred_region
      %s46 = ssub.s32 256, 256
      %47 = vsyncadd [#allocation6], %s46
      %s48 = sshll.u32 [#allocation7], 4
      %s49 = int_to_ptr.vmem [resolvable:$true] %s48
      %54 = dma.hbm_to_vmem [thread:$0]  %s2, 256, %s49, [#allocation6], 64, 64, 4
    $region13: #{tpu_custom_call.1} parent=1 // pred_fallthru
      _
    // Predicated region
    $region14: #{tpu_custom_call.1} parent=1 // pred_check
      _
    $region15: #{tpu_custom_call.1} parent=1 // pred_check_branch
      %56 = sbr.rel (0) target = $region17
    $region16: #{tpu_custom_call.1} parent=1 // pred_region
      _
    $region17: #{tpu_custom_call.1} parent=1 // pred_fallthru
      _
    // Predicated region
    $region18: #{tpu_custom_call.1} parent=1 // pred_check
      _
    $region19: #{tpu_custom_call.1} parent=1 // pred_check_branch
      %58 = sbr.rel (0) target = $region21
    $region20: #{tpu_custom_call.1} parent=1 // pred_region
      _
    $region21: #{tpu_custom_call.1} parent=1 // pred_fallthru
      _
    // Predicated region
    $region22: #{tpu_custom_call.1} parent=1 // pred_check
      _
    $region23: #{tpu_custom_call.1} parent=1 // pred_check_branch
      %60 = sbr.rel (0) target = $region25
    $region24: #{tpu_custom_call.1} parent=1 // pred_region
      _
    $region25: #{tpu_custom_call.1} parent=1 // pred_fallthru
      _
    // Predicated region
    $region26: #{tpu_custom_call.1} parent=1 // pred_check
      _
    $region27: #{tpu_custom_call.1} parent=1 // pred_check_branch
      %62 = sbr.rel (0) target = $region29
    $region28: #{tpu_custom_call.1} parent=1 // pred_region
      _
    $region29: #{tpu_custom_call.1} parent=1 // pred_fallthru
      _
    // Predicated region
    $region30: #{tpu_custom_call.1} parent=1 // pred_check
      _
    $region31: #{tpu_custom_call.1} parent=1 // pred_check_branch
      %64 = sbr.rel (0) target = $region33
    $region32: #{tpu_custom_call.1} parent=1 // pred_region
      _
    $region33: #{tpu_custom_call.1} parent=1 // pred_fallthru
      _
    // Predicated region
    $region34: #{tpu_custom_call.1} parent=1 // pred_check
      _
    $region35: #{tpu_custom_call.1} parent=1 // pred_check_branch
      %66 = sbr.rel (0) target = $region37
    $region36: #{tpu_custom_call.1} parent=1 // pred_region
      _
    $region37: #{tpu_custom_call.1} parent=1 // pred_fallthru
      _
    // Predicated region
    $region38: #{tpu_custom_call.1} parent=1 // pred_check
      _
    $region39: #{tpu_custom_call.1} parent=1 // pred_check_branch
      %68 = sbr.rel (0) target = $region41
    $region40: #{tpu_custom_call.1} parent=1 // pred_region
      _
    $region41: #{tpu_custom_call.1} parent=1 // pred_fallthru
      _
    // Predicated region
    $region42: #{tpu_custom_call.1} parent=1 // pred_check
      _
    $region43: #{tpu_custom_call.1} parent=1 // pred_check_branch
      %70 = sbr.rel (0) target = $region45
    $region44: #{tpu_custom_call.1} parent=1 // pred_region
      %s72 = ssub.s32 256, 256
      %73 = vsyncadd [#allocation9], %s72
      %s74 = sshll.u32 [#allocation8], 4
      %s75 = int_to_ptr.vmem [resolvable:$true] %s74
      %80 = dma.hbm_to_vmem [thread:$0]  %s10, 256, %s75, [#allocation9], 64, 64, 4
    $region45: #{tpu_custom_call.1} parent=1 // pred_fallthru
      _
    // Predicated region
    $region46: #{tpu_custom_call.1} parent=1 // pred_check
      _
    $region47: #{tpu_custom_call.1} parent=1 // pred_check_branch
      %82 = sbr.rel (0) target = $region49
    $region48: #{tpu_custom_call.1} parent=1 // pred_region
      _
    $region49: #{tpu_custom_call.1} parent=1 // pred_fallthru
      _
    // Predicated region
    $region50: #{tpu_custom_call.1} parent=1 // pred_check
      _
    $region51: #{tpu_custom_call.1} parent=1 // pred_check_branch
      %84 = sbr.rel (0) target = $region53
    $region52: #{tpu_custom_call.1} parent=1 // pred_region
      _
    $region53: #{tpu_custom_call.1} parent=1 // pred_fallthru
      _
    // Predicated region
    $region54: #{tpu_custom_call.1} parent=1 // pred_check
      _
    $region55: #{tpu_custom_call.1} parent=1 // pred_check_branch
      %86 = sbr.rel (0) target = $region57
    $region56: #{tpu_custom_call.1} parent=1 // pred_region
      _
    $region57: #{tpu_custom_call.1} parent=1 // pred_fallthru
      _
    // Predicated region
    $region58: #{tpu_custom_call.1} parent=1 // pred_check
      _
    $region59: #{tpu_custom_call.1} parent=1 // pred_check_branch
      %88 = sbr.rel (0) target = $region61
    $region60: #{tpu_custom_call.1} parent=1 // pred_region
      %89 = dma.done [#allocation3], 128
    $region61: #{tpu_custom_call.1} parent=1 // pred_fallthru
      _
    // Predicated region
    $region62: #{tpu_custom_call.1} parent=1 // pred_check
      _
    $region63: #{tpu_custom_call.1} parent=1 // pred_check_branch
      %91 = sbr.rel (0) target = $region65
    $region64: #{tpu_custom_call.1} parent=1 // pred_region
      %92 = dma.done [#allocation6], 128
    $region65: #{tpu_custom_call.1} parent=1 // pred_fallthru
      _
    // Predicated region
    $region66: #{tpu_custom_call.1} parent=1 // pred_check
      _
    $region67: #{tpu_custom_call.1} parent=1 // pred_check_branch
      %94 = sbr.rel (0) target = $region69
    $region68: #{tpu_custom_call.1} parent=1 // pred_region
      %95 = dma.done [#allocation6], 256
    $region69: #{tpu_custom_call.1} parent=1 // pred_fallthru
      _
    // Predicated region
    $region70: #{tpu_custom_call.1} parent=1 // pred_check
      _
    $region71: #{tpu_custom_call.1} parent=1 // pred_check_branch
      %97 = sbr.rel (0) target = $region73
    $region72: #{tpu_custom_call.1} parent=1 // pred_region
      %98 = dma.done [#allocation9], 256
    $region73: #{tpu_custom_call.1} parent=1 // pred_fallthru
      _
    %v100 = vld [vmem:[#allocation2] sm:$0xff]
    %v101 = vpack.c.bf16 %v100, %v100
    %v102 = vld [vmem:[#allocation5] sm:$0xff]
    %v103 = vld [vmem:[#allocation7] sm:$0xf]
    %v104 = vld [vmem:[#allocation7 + $0x4] sm:$0xf]
    %v105 = vld [vmem:[#allocation7 + $0x8] sm:$0xf]
    %v106 = vld [vmem:[#allocation7 + $0xc] sm:$0xf]
    %v107 = vld [vmem:[%s3] sm:$0x1]
    %v109 = vlaneseq
    %v110 = vshrl.u32 %v109, 7
    %v111 = vsub.s32 0, %v110
    %v112 = vrot.slane %v107, %v111
    %v118 = vunpack.c.l.b16 %v103
    %v119 = vunpack.c.l.b16 %v104
    %v120 = vunpack.c.l.b16 %v105
    %v121 = vunpack.c.l.b16 %v106
    %v122 = vpack.c.b16 %v119, %v118
    %v123 = vpack.c.b16 %v121, %v120
    %vm126 = vcmask 261120
    %v128 = vsel %vm126, %v101, 0
    %130 = vmatprep.subr.bf16.mxu0 0
    %131 = vmatpush1.bf16.msra.mxu0 %v122
    %132 = vmatprep.subr.bf16.mxu0 0
    %133 = vmatpush1.bf16.msra.mxu0 %v123
    %134 = vmatprep.subr.bf16.mxu0 0
    %135 = vmatpush1.bf16.msra.mxu0 0
    %136 = vmatprep.subr.bf16.mxu0 0
    %137 = vmatpush1.bf16.msra.mxu0 0
    %138 = vmatprep.subr.bf16.mxu0 0
    %139 = vmatpush1.bf16.msra.mxu0 0
    %140 = vmatprep.subr.bf16.mxu0 0
    %141 = vmatpush1.bf16.msra.mxu0 0
    %142 = vmatprep.subr.bf16.mxu0 0
    %143 = vmatpush1.bf16.msra.mxu0 0
    %144 = vmatprep.subr.bf16.mxu0 0
    %145 = vmatpush1.bf16.msra.mxu0 0
    %146 = vmatprep.subr.bf16.mxu0 0
    %147 = vmatpush1.bf16.msra.mxu0 0
    %148 = vmatprep.subr.bf16.mxu0 0
    %149 = vmatpush1.bf16.msra.mxu0 0
    %150 = vmatprep.subr.bf16.mxu0 0
    %151 = vmatpush1.bf16.msra.mxu0 0
    %152 = vmatprep.subr.bf16.mxu0 0
    %153 = vmatpush1.bf16.msra.mxu0 0
    %154 = vmatprep.subr.bf16.mxu0 0
    %155 = vmatpush1.bf16.msra.mxu0 0
    %156 = vmatprep.subr.bf16.mxu0 0
    %157 = vmatpush1.bf16.msra.mxu0 0
    %158 = vmatprep.subr.bf16.mxu0 0
    %159 = vmatpush1.bf16.msra.mxu0 0
    %160 = vmatprep.subr.bf16.mxu0 0
    %161 = vmatpush1.bf16.msra.mxu0 0
    %162 = vmatprep.mubr.bf16.mxu0 0
    %163 = vmatmul.mubr.bf16.gmra.mrb[0].mxu0 %v128
    %v164 = vpop.f32.mrb[0].mxu0
    %v165 = vadd.f32 %v112, %v164
    %v166 = vpop.f32.mrb[0].mxu0
    %v167 = vpop.f32.mrb[0].mxu0
    %v168 = vpop.f32.mrb[0].mxu0
    %169 = vdwg.mxu0
    %v170 = vmax.f32 %v165, 0.0
    %v171 = vpack.c.bf16 %v170, %v170
    %v172 = vld [vmem:[%s4] sm:$0xf]
    %v173 = vld [vmem:[%s4 + $0x4] sm:$0xf]
    %v174 = vld [vmem:[%s4 + $0x8] sm:$0xf]
    %v175 = vld [vmem:[%s4 + $0xc] sm:$0xf]
    %v176 = vld [vmem:[%s4 + $0x10] sm:$0xf]
    %v177 = vld [vmem:[%s4 + $0x14] sm:$0xf]
    %v178 = vld [vmem:[%s4 + $0x18] sm:$0xf]
    %v179 = vld [vmem:[%s4 + $0x1c] sm:$0xf]
    %v180 = vld [vmem:[%s5] sm:$0x1]
    %v182 = vlaneseq
    %v183 = vshrl.u32 %v182, 7
    %v184 = vsub.s32 0, %v183
    %v185 = vrot.slane %v180, %v184
    %v195 = vunpack.c.l.b16 %v172
    %v196 = vunpack.c.l.b16 %v173
    %v197 = vunpack.c.l.b16 %v174
    %v198 = vunpack.c.l.b16 %v175
    %v199 = vunpack.c.l.b16 %v176
    %v200 = vunpack.c.l.b16 %v177
    %v201 = vunpack.c.l.b16 %v178
    %v202 = vunpack.c.l.b16 %v179
    %v203 = vpack.c.b16 %v196, %v195
    %v204 = vpack.c.b16 %v198, %v197
    %v205 = vpack.c.b16 %v200, %v199
    %v206 = vpack.c.b16 %v202, %v201
    %vm211 = vcmask 523264
    %v213 = vsel %vm211, %v171, 0
    %215 = vmatprep.subr.bf16.mxu0 0
    %216 = vmatpush1.bf16.msra.mxu0 %v203
    %217 = vmatprep.subr.bf16.mxu0 0
    %218 = vmatpush1.bf16.msra.mxu0 %v204
    %219 = vmatprep.subr.bf16.mxu0 0
    %220 = vmatpush1.bf16.msra.mxu0 %v205
    %221 = vmatprep.subr.bf16.mxu0 0
    %222 = vmatpush1.bf16.msra.mxu0 %v206
    %223 = vmatprep.subr.bf16.mxu0 0
    %224 = vmatpush1.bf16.msra.mxu0 0
    %225 = vmatprep.subr.bf16.mxu0 0
    %226 = vmatpush1.bf16.msra.mxu0 0
    %227 = vmatprep.subr.bf16.mxu0 0
    %228 = vmatpush1.bf16.msra.mxu0 0
    %229 = vmatprep.subr.bf16.mxu0 0
    %230 = vmatpush1.bf16.msra.mxu0 0
    %231 = vmatprep.subr.bf16.mxu0 0
    %232 = vmatpush1.bf16.msra.mxu0 0
    %233 = vmatprep.subr.bf16.mxu0 0
    %234 = vmatpush1.bf16.msra.mxu0 0
    %235 = vmatprep.subr.bf16.mxu0 0
    %236 = vmatpush1.bf16.msra.mxu0 0
    %237 = vmatprep.subr.bf16.mxu0 0
    %238 = vmatpush1.bf16.msra.mxu0 0
    %239 = vmatprep.subr.bf16.mxu0 0
    %240 = vmatpush1.bf16.msra.mxu0 0
    %241 = vmatprep.subr.bf16.mxu0 0
    %242 = vmatpush1.bf16.msra.mxu0 0
    %243 = vmatprep.subr.bf16.mxu0 0
    %244 = vmatpush1.bf16.msra.mxu0 0
    %245 = vmatprep.subr.bf16.mxu0 0
    %246 = vmatpush1.bf16.msra.mxu0 0
    %247 = vmatprep.mubr.bf16.mxu0 0
    %248 = vmatmul.mubr.bf16.gmra.mrb[0].mxu0 %v213
    %v249 = vpop.f32.mrb[0].mxu0
    %v250 = vadd.f32 %v185, %v249
    %v251 = vpop.f32.mrb[0].mxu0
    %v252 = vpop.f32.mrb[0].mxu0
    %v253 = vpop.f32.mrb[0].mxu0
    %254 = vdwg.mxu0
    %256 = vrot.lane.b32.xlu0 %v102, 32
    %v257 = vpop.permute.xlu0 %256
    %v259 = vsel %vm126, %v102, %v257
    %v260 = vmul.f32 %v250, %v259
    %v261 = vpack.c.bf16 %v260, %v260
    %v262 = vld [vmem:[%s6] sm:$0xf]
    %v263 = vld [vmem:[%s6 + $0x4] sm:$0xf]
    %v264 = vld [vmem:[%s6 + $0x8] sm:$0xf]
    %v265 = vld [vmem:[%s6 + $0xc] sm:$0xf]
    %v266 = vld [vmem:[%s6 + $0x10] sm:$0xf]
    %v267 = vld [vmem:[%s6 + $0x14] sm:$0xf]
    %v268 = vld [vmem:[%s6 + $0x18] sm:$0xf]
    %v269 = vld [vmem:[%s6 + $0x1c] sm:$0xf]
    %v278 = vunpack.c.l.b16 %v262
    %v279 = vunpack.c.l.b16 %v263
    %v280 = vunpack.c.l.b16 %v264
    %v281 = vunpack.c.l.b16 %v265
    %v282 = vunpack.c.l.b16 %v266
    %v283 = vunpack.c.l.b16 %v267
    %v284 = vunpack.c.l.b16 %v268
    %v285 = vunpack.c.l.b16 %v269
    %v286 = vpack.c.b16 %v279, %v278
    %v287 = vpack.c.b16 %v281, %v280
    %v288 = vpack.c.b16 %v283, %v282
    %v289 = vpack.c.b16 %v285, %v284
    %v295 = vsel %vm211, %v261, 0
    %297 = vmatprep.subr.bf16.mxu0 0
    %298 = vmatpush1.bf16.msra.mxu0 %v286
    %299 = vmatprep.subr.bf16.mxu0 0
    %300 = vmatpush1.bf16.msra.mxu0 %v287
    %301 = vmatprep.subr.bf16.mxu0 0
    %302 = vmatpush1.bf16.msra.mxu0 %v288
    %303 = vmatprep.subr.bf16.mxu0 0
    %304 = vmatpush1.bf16.msra.mxu0 %v289
    %305 = vmatprep.subr.bf16.mxu0 0
    %306 = vmatpush1.bf16.msra.mxu0 0
    %307 = vmatprep.subr.bf16.mxu0 0
    %308 = vmatpush1.bf16.msra.mxu0 0
    %309 = vmatprep.subr.bf16.mxu0 0
    %310 = vmatpush1.bf16.msra.mxu0 0
    %311 = vmatprep.subr.bf16.mxu0 0
    %312 = vmatpush1.bf16.msra.mxu0 0
    %313 = vmatprep.subr.bf16.mxu0 0
    %314 = vmatpush1.bf16.msra.mxu0 0
    %315 = vmatprep.subr.bf16.mxu0 0
    %316 = vmatpush1.bf16.msra.mxu0 0
    %317 = vmatprep.subr.bf16.mxu0 0
    %318 = vmatpush1.bf16.msra.mxu0 0
    %319 = vmatprep.subr.bf16.mxu0 0
    %320 = vmatpush1.bf16.msra.mxu0 0
    %321 = vmatprep.subr.bf16.mxu0 0
    %322 = vmatpush1.bf16.msra.mxu0 0
    %323 = vmatprep.subr.bf16.mxu0 0
    %324 = vmatpush1.bf16.msra.mxu0 0
    %325 = vmatprep.subr.bf16.mxu0 0
    %326 = vmatpush1.bf16.msra.mxu0 0
    %327 = vmatprep.subr.bf16.mxu0 0
    %328 = vmatpush1.bf16.msra.mxu0 0
    %329 = vmatprep.mubr.bf16.mxu0 0
    %330 = vmatmul.mubr.bf16.gmra.mrb[0].mxu0 %v295
    %v331 = vpop.f32.mrb[0].mxu0
    %v332 = vadd.f32 0.0, %v331
    %v333 = vpop.f32.mrb[0].mxu0
    %v334 = vpop.f32.mrb[0].mxu0
    %v335 = vpop.f32.mrb[0].mxu0
    %336 = vdwg.mxu0
    %v337 = vmul.f32 %v332, %v332
    %339 = vrot.lane.b32.xlu0 %v337, 32
    %v340 = vpop.permute.xlu0 %339
    %v342 = vsel %vm126, %v332, %v340
    %v343 = vld [vmem:[%s9] sm:$0xff]
    %v344 = vld [vmem:[%s9 + $0x8] sm:$0xff]
    %v345 = vld [vmem:[%s9 + $0x10] sm:$0xff]
    %v346 = vld [vmem:[%s9 + $0x18] sm:$0xff]
    %v347 = vld [vmem:[%s9 + $0x20] sm:$0xff]
    %v348 = vld [vmem:[%s9 + $0x28] sm:$0xff]
    %v349 = vld [vmem:[%s9 + $0x30] sm:$0xff]
    %v350 = vld [vmem:[%s9 + $0x38] sm:$0xff]
    %v352 = vsel %vm211, %v342, 0
    %354 = vmatprep.subr.mxu0 0.0
    %v355 = vand.u32 %v343, 4294901760
    %356 = vmatpush1.msra.mxu0 %v355
    %357 = vmatprep.subr.mxu0 0.0
    %v358 = vand.u32 %v344, 4294901760
    %359 = vmatpush1.msra.mxu0 %v358
    %360 = vmatprep.subr.mxu0 0.0
    %v361 = vand.u32 %v345, 4294901760
    %362 = vmatpush1.msra.mxu0 %v361
    %363 = vmatprep.subr.mxu0 0.0
    %v364 = vand.u32 %v346, 4294901760
    %365 = vmatpush1.msra.mxu0 %v364
    %366 = vmatprep.subr.mxu0 0.0
    %v367 = vand.u32 %v347, 4294901760
    %368 = vmatpush1.msra.mxu0 %v367
    %369 = vmatprep.subr.mxu0 0.0
    %v370 = vand.u32 %v348, 4294901760
    %371 = vmatpush1.msra.mxu0 %v370
    %372 = vmatprep.subr.mxu0 0.0
    %v373 = vand.u32 %v349, 4294901760
    %374 = vmatpush1.msra.mxu0 %v373
    %375 = vmatprep.subr.mxu0 0.0
    %v376 = vand.u32 %v350, 4294901760
    %377 = vmatpush1.msra.mxu0 %v376
    %378 = vmatprep.subr.mxu0 0.0
    %379 = vmatpush1.msra.mxu0 0.0
    %380 = vmatprep.subr.mxu0 0.0
    %381 = vmatpush1.msra.mxu0 0.0
    %382 = vmatprep.subr.mxu0 0.0
    %383 = vmatpush1.msra.mxu0 0.0
    %384 = vmatprep.subr.mxu0 0.0
    %385 = vmatpush1.msra.mxu0 0.0
    %386 = vmatprep.subr.mxu0 0.0
    %387 = vmatpush1.msra.mxu0 0.0
    %388 = vmatprep.subr.mxu0 0.0
    %389 = vmatpush1.msra.mxu0 0.0
    %390 = vmatprep.subr.mxu0 0.0
    %391 = vmatpush1.msra.mxu0 0.0
    %392 = vmatprep.subr.mxu0 0.0
    %393 = vmatpush1.msra.mxu0 0.0
    %394 = vmatprep.subr.mxu0 0.0
    %395 = vmatpush1.msra.mxu0 0.0
    %396 = vmatprep.subr.mxu0 0.0
    %397 = vmatpush1.msra.mxu0 0.0
    %398 = vmatprep.subr.mxu0 0.0
    %399 = vmatpush1.msra.mxu0 0.0
    %400 = vmatprep.subr.mxu0 0.0
    %401 = vmatpush1.msra.mxu0 0.0
    %402 = vmatprep.subr.mxu0 0.0
    %403 = vmatpush1.msra.mxu0 0.0
    %404 = vmatprep.subr.mxu0 0.0
    %405 = vmatpush1.msra.mxu0 0.0
    %406 = vmatprep.subr.mxu0 0.0
    %407 = vmatpush1.msra.mxu0 0.0
    %408 = vmatprep.subr.mxu0 0.0
    %409 = vmatpush1.msra.mxu0 0.0
    %410 = vmatprep.subr.mxu0 0.0
    %411 = vmatpush1.msra.mxu0 0.0
    %412 = vmatprep.subr.mxu0 0.0
    %413 = vmatpush1.msra.mxu0 0.0
    %414 = vmatprep.subr.mxu0 0.0
    %415 = vmatpush1.msra.mxu0 0.0
    %416 = vmatprep.subr.mxu0 0.0
    %417 = vmatpush1.msra.mxu0 0.0
    %418 = vmatprep.subr.mxu0 0.0
    %419 = vmatpush1.msra.mxu0 0.0
    %420 = vmatprep.subr.mxu0 0.0
    %421 = vmatpush1.msra.mxu0 0.0
    %422 = vmatprep.subr.mxu0 0.0
    %423 = vmatpush1.msra.mxu0 0.0
    %424 = vmatprep.subr.mxu0 0.0
    %425 = vmatpush1.msra.mxu0 0.0
    %426 = vmatprep.mubr.f32.mxu0 0.0
    %v427 = vand.u32 %v352, 4294901760
    %v428 = vsub.f32 %v352, %v427
    %v429 = vand.u32 %v428, 4294901760
    %v430 = vsub.f32 %v428, %v429
    %v431 = vand.u32 %v430, 4294901760
    %432 = vmatmul.mubr.f32.gmra.mrb[0].mxu0 %v431
    %v433 = vpop.f32.mrb[0].mxu0
    %v434 = vadd.f32 0.0, %v433
    %v435 = vpop.f32.mrb[0].mxu0
    %436 = vdwg.mxu0
    %437 = vmatprep.subr.mxu0 0.0
    %v438 = vand.u32 %v343, 4294901760
    %v439 = vsub.f32 %v343, %v438
    %v440 = vand.u32 %v439, 4294901760
    %v441 = vsub.f32 %v439, %v440
    %v442 = vand.u32 %v441, 4294901760
    %443 = vmatpush1.msra.mxu0 %v442
    %444 = vmatprep.subr.mxu0 0.0
    %v445 = vand.u32 %v344, 4294901760
    %v446 = vsub.f32 %v344, %v445
    %v447 = vand.u32 %v446, 4294901760
    %v448 = vsub.f32 %v446, %v447
    %v449 = vand.u32 %v448, 4294901760
    %450 = vmatpush1.msra.mxu0 %v449
    %451 = vmatprep.subr.mxu0 0.0
    %v452 = vand.u32 %v345, 4294901760
    %v453 = vsub.f32 %v345, %v452
    %v454 = vand.u32 %v453, 4294901760
    %v455 = vsub.f32 %v453, %v454
    %v456 = vand.u32 %v455, 4294901760
    %457 = vmatpush1.msra.mxu0 %v456
    %458 = vmatprep.subr.mxu0 0.0
    %v459 = vand.u32 %v346, 4294901760
    %v460 = vsub.f32 %v346, %v459
    %v461 = vand.u32 %v460, 4294901760
    %v462 = vsub.f32 %v460, %v461
    %v463 = vand.u32 %v462, 4294901760
    %464 = vmatpush1.msra.mxu0 %v463
    %465 = vmatprep.subr.mxu0 0.0
    %v466 = vand.u32 %v347, 4294901760
    %v467 = vsub.f32 %v347, %v466
    %v468 = vand.u32 %v467, 4294901760
    %v469 = vsub.f32 %v467, %v468
    %v470 = vand.u32 %v469, 4294901760
    %471 = vmatpush1.msra.mxu0 %v470
    %472 = vmatprep.subr.mxu0 0.0
    %v473 = vand.u32 %v348, 4294901760
    %v474 = vsub.f32 %v348, %v473
    %v475 = vand.u32 %v474, 4294901760
    %v476 = vsub.f32 %v474, %v475
    %v477 = vand.u32 %v476, 4294901760
    %478 = vmatpush1.msra.mxu0 %v477
    %479 = vmatprep.subr.mxu0 0.0
    %v480 = vand.u32 %v349, 4294901760
    %v481 = vsub.f32 %v349, %v480
    %v482 = vand.u32 %v481, 4294901760
    %v483 = vsub.f32 %v481, %v482
    %v484 = vand.u32 %v483, 4294901760
    %485 = vmatpush1.msra.mxu0 %v484
    %486 = vmatprep.subr.mxu0 0.0
    %v487 = vand.u32 %v350, 4294901760
    %v488 = vsub.f32 %v350, %v487
    %v489 = vand.u32 %v488, 4294901760
    %v490 = vsub.f32 %v488, %v489
    %v491 = vand.u32 %v490, 4294901760
    %492 = vmatpush1.msra.mxu0 %v491
    %493 = vmatprep.subr.mxu0 0.0
    %494 = vmatpush1.msra.mxu0 0.0
    %495 = vmatprep.subr.mxu0 0.0
    %496 = vmatpush1.msra.mxu0 0.0
    %497 = vmatprep.subr.mxu0 0.0
    %498 = vmatpush1.msra.mxu0 0.0
    %499 = vmatprep.subr.mxu0 0.0
    %500 = vmatpush1.msra.mxu0 0.0
    %501 = vmatprep.subr.mxu0 0.0
    %502 = vmatpush1.msra.mxu0 0.0
    %503 = vmatprep.subr.mxu0 0.0
    %504 = vmatpush1.msra.mxu0 0.0
    %505 = vmatprep.subr.mxu0 0.0
    %506 = vmatpush1.msra.mxu0 0.0
    %507 = vmatprep.subr.mxu0 0.0
    %508 = vmatpush1.msra.mxu0 0.0
    %509 = vmatprep.subr.mxu0 0.0
    %510 = vmatpush1.msra.mxu0 0.0
    %511 = vmatprep.subr.mxu0 0.0
    %512 = vmatpush1.msra.mxu0 0.0
    %513 = vmatprep.subr.mxu0 0.0
    %514 = vmatpush1.msra.mxu0 0.0
    %515 = vmatprep.subr.mxu0 0.0
    %516 = vmatpush1.msra.mxu0 0.0
    %517 = vmatprep.subr.mxu0 0.0
    %518 = vmatpush1.msra.mxu0 0.0
    %519 = vmatprep.subr.mxu0 0.0
    %520 = vmatpush1.msra.mxu0 0.0
    %521 = vmatprep.subr.mxu0 0.0
    %522 = vmatpush1.msra.mxu0 0.0
    %523 = vmatprep.subr.mxu0 0.0
    %524 = vmatpush1.msra.mxu0 0.0
    %525 = vmatprep.subr.mxu0 0.0
    %526 = vmatpush1.msra.mxu0 0.0
    %527 = vmatprep.subr.mxu0 0.0
    %528 = vmatpush1.msra.mxu0 0.0
    %529 = vmatprep.subr.mxu0 0.0
    %530 = vmatpush1.msra.mxu0 0.0
    %531 = vmatprep.subr.mxu0 0.0
    %532 = vmatpush1.msra.mxu0 0.0
    %533 = vmatprep.subr.mxu0 0.0
    %534 = vmatpush1.msra.mxu0 0.0
    %535 = vmatprep.subr.mxu0 0.0
    %536 = vmatpush1.msra.mxu0 0.0
    %537 = vmatprep.subr.mxu0 0.0
    %538 = vmatpush1.msra.mxu0 0.0
    %539 = vmatprep.subr.mxu0 0.0
    %540 = vmatpush1.msra.mxu0 0.0
    %541 = vmatprep.mubr.f32.mxu0 0.0
    %v542 = vand.u32 %v352, 4294901760
    %543 = vmatmul.mubr.f32.gmra.mrb[0].mxu0 %v542
    %v544 = vpop.f32.mrb[0].mxu0
    %v545 = vadd.f32 %v434, %v544
    %v546 = vpop.f32.mrb[0].mxu0
    %547 = vdwg.mxu0
    %548 = vmatprep.subr.mxu0 0.0
    %v549 = vand.u32 %v343, 4294901760
    %v550 = vsub.f32 %v343, %v549
    %551 = vmatpush1.msra.mxu0 %v550
    %552 = vmatprep.subr.mxu0 0.0
    %v553 = vand.u32 %v344, 4294901760
    %v554 = vsub.f32 %v344, %v553
    %555 = vmatpush1.msra.mxu0 %v554
    %556 = vmatprep.subr.mxu0 0.0
    %v557 = vand.u32 %v345, 4294901760
    %v558 = vsub.f32 %v345, %v557
    %559 = vmatpush1.msra.mxu0 %v558
    %560 = vmatprep.subr.mxu0 0.0
    %v561 = vand.u32 %v346, 4294901760
    %v562 = vsub.f32 %v346, %v561
    %563 = vmatpush1.msra.mxu0 %v562
    %564 = vmatprep.subr.mxu0 0.0
    %v565 = vand.u32 %v347, 4294901760
    %v566 = vsub.f32 %v347, %v565
    %567 = vmatpush1.msra.mxu0 %v566
    %568 = vmatprep.subr.mxu0 0.0
    %v569 = vand.u32 %v348, 4294901760
    %v570 = vsub.f32 %v348, %v569
    %571 = vmatpush1.msra.mxu0 %v570
    %572 = vmatprep.subr.mxu0 0.0
    %v573 = vand.u32 %v349, 4294901760
    %v574 = vsub.f32 %v349, %v573
    %575 = vmatpush1.msra.mxu0 %v574
    %576 = vmatprep.subr.mxu0 0.0
    %v577 = vand.u32 %v350, 4294901760
    %v578 = vsub.f32 %v350, %v577
    %579 = vmatpush1.msra.mxu0 %v578
    %580 = vmatprep.subr.mxu0 0.0
    %581 = vmatpush1.msra.mxu0 0.0
    %582 = vmatprep.subr.mxu0 0.0
    %583 = vmatpush1.msra.mxu0 0.0
    %584 = vmatprep.subr.mxu0 0.0
    %585 = vmatpush1.msra.mxu0 0.0
    %586 = vmatprep.subr.mxu0 0.0
    %587 = vmatpush1.msra.mxu0 0.0
    %588 = vmatprep.subr.mxu0 0.0
    %589 = vmatpush1.msra.mxu0 0.0
    %590 = vmatprep.subr.mxu0 0.0
    %591 = vmatpush1.msra.mxu0 0.0
    %592 = vmatprep.subr.mxu0 0.0
    %593 = vmatpush1.msra.mxu0 0.0
    %594 = vmatprep.subr.mxu0 0.0
    %595 = vmatpush1.msra.mxu0 0.0
    %596 = vmatprep.subr.mxu0 0.0
    %597 = vmatpush1.msra.mxu0 0.0
    %598 = vmatprep.subr.mxu0 0.0
    %599 = vmatpush1.msra.mxu0 0.0
    %600 = vmatprep.subr.mxu0 0.0
    %601 = vmatpush1.msra.mxu0 0.0
    %602 = vmatprep.subr.mxu0 0.0
    %603 = vmatpush1.msra.mxu0 0.0
    %604 = vmatprep.subr.mxu0 0.0
    %605 = vmatpush1.msra.mxu0 0.0
    %606 = vmatprep.subr.mxu0 0.0
    %607 = vmatpush1.msra.mxu0 0.0
    %608 = vmatprep.subr.mxu0 0.0
    %609 = vmatpush1.msra.mxu0 0.0
    %610 = vmatprep.subr.mxu0 0.0
    %611 = vmatpush1.msra.mxu0 0.0
    %612 = vmatprep.subr.mxu0 0.0
    %613 = vmatpush1.msra.mxu0 0.0
    %614 = vmatprep.subr.mxu0 0.0
    %615 = vmatpush1.msra.mxu0 0.0
    %616 = vmatprep.subr.mxu0 0.0
    %617 = vmatpush1.msra.mxu0 0.0
    %618 = vmatprep.subr.mxu0 0.0
    %619 = vmatpush1.msra.mxu0 0.0
    %620 = vmatprep.subr.mxu0 0.0
    %621 = vmatpush1.msra.mxu0 0.0
    %622 = vmatprep.subr.mxu0 0.0
    %623 = vmatpush1.msra.mxu0 0.0
    %624 = vmatprep.subr.mxu0 0.0
    %625 = vmatpush1.msra.mxu0 0.0
    %626 = vmatprep.subr.mxu0 0.0
    %627 = vmatpush1.msra.mxu0 0.0
    %628 = vmatprep.mubr.f32.mxu0 0.0
    %v629 = vand.u32 %v352, 4294901760
    %v630 = vsub.f32 %v352, %v629
    %631 = vmatmul.mubr.f32.gmra.mrb[0].mxu0 %v630
    %v632 = vpop.f32.mrb[0].mxu0
    %v633 = vadd.f32 %v545, %v632
    %v634 = vpop.f32.mrb[0].mxu0
    %635 = vdwg.mxu0
    %636 = vmatprep.subr.mxu0 0.0
    %v637 = vand.u32 %v343, 4294901760
    %638 = vmatpush1.msra.mxu0 %v637
    %639 = vmatprep.subr.mxu0 0.0
    %v640 = vand.u32 %v344, 4294901760
    %641 = vmatpush1.msra.mxu0 %v640
    %642 = vmatprep.subr.mxu0 0.0
    %v643 = vand.u32 %v345, 4294901760
    %644 = vmatpush1.msra.mxu0 %v643
    %645 = vmatprep.subr.mxu0 0.0
    %v646 = vand.u32 %v346, 4294901760
    %647 = vmatpush1.msra.mxu0 %v646
    %648 = vmatprep.subr.mxu0 0.0
    %v649 = vand.u32 %v347, 4294901760
    %650 = vmatpush1.msra.mxu0 %v649
    %651 = vmatprep.subr.mxu0 0.0
    %v652 = vand.u32 %v348, 4294901760
    %653 = vmatpush1.msra.mxu0 %v652
    %654 = vmatprep.subr.mxu0 0.0
    %v655 = vand.u32 %v349, 4294901760
    %656 = vmatpush1.msra.mxu0 %v655
    %657 = vmatprep.subr.mxu0 0.0
    %v658 = vand.u32 %v350, 4294901760
    %659 = vmatpush1.msra.mxu0 %v658
    %660 = vmatprep.subr.mxu0 0.0
    %661 = vmatpush1.msra.mxu0 0.0
    %662 = vmatprep.subr.mxu0 0.0
    %663 = vmatpush1.msra.mxu0 0.0
    %664 = vmatprep.subr.mxu0 0.0
    %665 = vmatpush1.msra.mxu0 0.0
    %666 = vmatprep.subr.mxu0 0.0
    %667 = vmatpush1.msra.mxu0 0.0
    %668 = vmatprep.subr.mxu0 0.0
    %669 = vmatpush1.msra.mxu0 0.0
    %670 = vmatprep.subr.mxu0 0.0
    %671 = vmatpush1.msra.mxu0 0.0
    %672 = vmatprep.subr.mxu0 0.0
    %673 = vmatpush1.msra.mxu0 0.0
    %674 = vmatprep.subr.mxu0 0.0
    %675 = vmatpush1.msra.mxu0 0.0
    %676 = vmatprep.subr.mxu0 0.0
    %677 = vmatpush1.msra.mxu0 0.0
    %678 = vmatprep.subr.mxu0 0.0
    %679 = vmatpush1.msra.mxu0 0.0
    %680 = vmatprep.subr.mxu0 0.0
    %681 = vmatpush1.msra.mxu0 0.0
    %682 = vmatprep.subr.mxu0 0.0
    %683 = vmatpush1.msra.mxu0 0.0
    %684 = vmatprep.subr.mxu0 0.0
    %685 = vmatpush1.msra.mxu0 0.0
    %686 = vmatprep.subr.mxu0 0.0
    %687 = vmatpush1.msra.mxu0 0.0
    %688 = vmatprep.subr.mxu0 0.0
    %689 = vmatpush1.msra.mxu0 0.0
    %690 = vmatprep.subr.mxu0 0.0
    %691 = vmatpush1.msra.mxu0 0.0
    %692 = vmatprep.subr.mxu0 0.0
    %693 = vmatpush1.msra.mxu0 0.0
    %694 = vmatprep.subr.mxu0 0.0
    %695 = vmatpush1.msra.mxu0 0.0
    %696 = vmatprep.subr.mxu0 0.0
    %697 = vmatpush1.msra.mxu0 0.0
    %698 = vmatprep.subr.mxu0 0.0
    %699 = vmatpush1.msra.mxu0 0.0
    %700 = vmatprep.subr.mxu0 0.0
    %701 = vmatpush1.msra.mxu0 0.0
    %702 = vmatprep.subr.mxu0 0.0
    %703 = vmatpush1.msra.mxu0 0.0
    %704 = vmatprep.subr.mxu0 0.0
    %705 = vmatpush1.msra.mxu0 0.0
    %706 = vmatprep.subr.mxu0 0.0
    %707 = vmatpush1.msra.mxu0 0.0
    %708 = vmatprep.mubr.f32.mxu0 0.0
    %v709 = vand.u32 %v352, 4294901760
    %v710 = vsub.f32 %v352, %v709
    %v711 = vand.u32 %v710, 4294901760
    %712 = vmatmul.mubr.f32.gmra.mrb[0].mxu0 %v711
    %v713 = vpop.f32.mrb[0].mxu0
    %v714 = vadd.f32 %v633, %v713
    %v715 = vpop.f32.mrb[0].mxu0
    %716 = vdwg.mxu0
    %717 = vmatprep.subr.mxu0 0.0
    %v718 = vand.u32 %v343, 4294901760
    %v719 = vsub.f32 %v343, %v718
    %v720 = vand.u32 %v719, 4294901760
    %721 = vmatpush1.msra.mxu0 %v720
    %722 = vmatprep.subr.mxu0 0.0
    %v723 = vand.u32 %v344, 4294901760
    %v724 = vsub.f32 %v344, %v723
    %v725 = vand.u32 %v724, 4294901760
    %726 = vmatpush1.msra.mxu0 %v725
    %727 = vmatprep.subr.mxu0 0.0
    %v728 = vand.u32 %v345, 4294901760
    %v729 = vsub.f32 %v345, %v728
    %v730 = vand.u32 %v729, 4294901760
    %731 = vmatpush1.msra.mxu0 %v730
    %732 = vmatprep.subr.mxu0 0.0
    %v733 = vand.u32 %v346, 4294901760
    %v734 = vsub.f32 %v346, %v733
    %v735 = vand.u32 %v734, 4294901760
    %736 = vmatpush1.msra.mxu0 %v735
    %737 = vmatprep.subr.mxu0 0.0
    %v738 = vand.u32 %v347, 4294901760
    %v739 = vsub.f32 %v347, %v738
    %v740 = vand.u32 %v739, 4294901760
    %741 = vmatpush1.msra.mxu0 %v740
    %742 = vmatprep.subr.mxu0 0.0
    %v743 = vand.u32 %v348, 4294901760
    %v744 = vsub.f32 %v348, %v743
    %v745 = vand.u32 %v744, 4294901760
    %746 = vmatpush1.msra.mxu0 %v745
    %747 = vmatprep.subr.mxu0 0.0
    %v748 = vand.u32 %v349, 4294901760
    %v749 = vsub.f32 %v349, %v748
    %v750 = vand.u32 %v749, 4294901760
    %751 = vmatpush1.msra.mxu0 %v750
    %752 = vmatprep.subr.mxu0 0.0
    %v753 = vand.u32 %v350, 4294901760
    %v754 = vsub.f32 %v350, %v753
    %v755 = vand.u32 %v754, 4294901760
    %756 = vmatpush1.msra.mxu0 %v755
    %757 = vmatprep.subr.mxu0 0.0
    %758 = vmatpush1.msra.mxu0 0.0
    %759 = vmatprep.subr.mxu0 0.0
    %760 = vmatpush1.msra.mxu0 0.0
    %761 = vmatprep.subr.mxu0 0.0
    %762 = vmatpush1.msra.mxu0 0.0
    %763 = vmatprep.subr.mxu0 0.0
    %764 = vmatpush1.msra.mxu0 0.0
    %765 = vmatprep.subr.mxu0 0.0
    %766 = vmatpush1.msra.mxu0 0.0
    %767 = vmatprep.subr.mxu0 0.0
    %768 = vmatpush1.msra.mxu0 0.0
    %769 = vmatprep.subr.mxu0 0.0
    %770 = vmatpush1.msra.mxu0 0.0
    %771 = vmatprep.subr.mxu0 0.0
    %772 = vmatpush1.msra.mxu0 0.0
    %773 = vmatprep.subr.mxu0 0.0
    %774 = vmatpush1.msra.mxu0 0.0
    %775 = vmatprep.subr.mxu0 0.0
    %776 = vmatpush1.msra.mxu0 0.0
    %777 = vmatprep.subr.mxu0 0.0
    %778 = vmatpush1.msra.mxu0 0.0
    %779 = vmatprep.subr.mxu0 0.0
    %780 = vmatpush1.msra.mxu0 0.0
    %781 = vmatprep.subr.mxu0 0.0
    %782 = vmatpush1.msra.mxu0 0.0
    %783 = vmatprep.subr.mxu0 0.0
    %784 = vmatpush1.msra.mxu0 0.0
    %785 = vmatprep.subr.mxu0 0.0
    %786 = vmatpush1.msra.mxu0 0.0
    %787 = vmatprep.subr.mxu0 0.0
    %788 = vmatpush1.msra.mxu0 0.0
    %789 = vmatprep.subr.mxu0 0.0
    %790 = vmatpush1.msra.mxu0 0.0
    %791 = vmatprep.subr.mxu0 0.0
    %792 = vmatpush1.msra.mxu0 0.0
    %793 = vmatprep.subr.mxu0 0.0
    %794 = vmatpush1.msra.mxu0 0.0
    %795 = vmatprep.subr.mxu0 0.0
    %796 = vmatpush1.msra.mxu0 0.0
    %797 = vmatprep.subr.mxu0 0.0
    %798 = vmatpush1.msra.mxu0 0.0
    %799 = vmatprep.subr.mxu0 0.0
    %800 = vmatpush1.msra.mxu0 0.0
    %801 = vmatprep.subr.mxu0 0.0
    %802 = vmatpush1.msra.mxu0 0.0
    %803 = vmatprep.subr.mxu0 0.0
    %804 = vmatpush1.msra.mxu0 0.0
    %805 = vmatprep.mubr.f32.mxu0 0.0
    %v806 = vand.u32 %v352, 4294901760
    %807 = vmatmul.mubr.f32.gmra.mrb[0].mxu0 %v806
    %v808 = vpop.f32.mrb[0].mxu0
    %v809 = vadd.f32 %v714, %v808
    %v810 = vpop.f32.mrb[0].mxu0
    %811 = vdwg.mxu0
    %812 = vmatprep.subr.mxu0 0.0
    %v813 = vand.u32 %v343, 4294901760
    %814 = vmatpush1.msra.mxu0 %v813
    %815 = vmatprep.subr.mxu0 0.0
    %v816 = vand.u32 %v344, 4294901760
    %817 = vmatpush1.msra.mxu0 %v816
    %818 = vmatprep.subr.mxu0 0.0
    %v819 = vand.u32 %v345, 4294901760
    %820 = vmatpush1.msra.mxu0 %v819
    %821 = vmatprep.subr.mxu0 0.0
    %v822 = vand.u32 %v346, 4294901760
    %823 = vmatpush1.msra.mxu0 %v822
    %824 = vmatprep.subr.mxu0 0.0
    %v825 = vand.u32 %v347, 4294901760
    %826 = vmatpush1.msra.mxu0 %v825
    %827 = vmatprep.subr.mxu0 0.0
    %v828 = vand.u32 %v348, 4294901760
    %829 = vmatpush1.msra.mxu0 %v828
    %830 = vmatprep.subr.mxu0 0.0
    %v831 = vand.u32 %v349, 4294901760
    %832 = vmatpush1.msra.mxu0 %v831
    %833 = vmatprep.subr.mxu0 0.0
    %v834 = vand.u32 %v350, 4294901760
    %835 = vmatpush1.msra.mxu0 %v834
    %836 = vmatprep.subr.mxu0 0.0
    %837 = vmatpush1.msra.mxu0 0.0
    %838 = vmatprep.subr.mxu0 0.0
    %839 = vmatpush1.msra.mxu0 0.0
    %840 = vmatprep.subr.mxu0 0.0
    %841 = vmatpush1.msra.mxu0 0.0
    %842 = vmatprep.subr.mxu0 0.0
    %843 = vmatpush1.msra.mxu0 0.0
    %844 = vmatprep.subr.mxu0 0.0
    %845 = vmatpush1.msra.mxu0 0.0
    %846 = vmatprep.subr.mxu0 0.0
    %847 = vmatpush1.msra.mxu0 0.0
    %848 = vmatprep.subr.mxu0 0.0
    %849 = vmatpush1.msra.mxu0 0.0
    %850 = vmatprep.subr.mxu0 0.0
    %851 = vmatpush1.msra.mxu0 0.0
    %852 = vmatprep.subr.mxu0 0.0
    %853 = vmatpush1.msra.mxu0 0.0
    %854 = vmatprep.subr.mxu0 0.0
    %855 = vmatpush1.msra.mxu0 0.0
    %856 = vmatprep.subr.mxu0 0.0
    %857 = vmatpush1.msra.mxu0 0.0
    %858 = vmatprep.subr.mxu0 0.0
    %859 = vmatpush1.msra.mxu0 0.0
    %860 = vmatprep.subr.mxu0 0.0
    %861 = vmatpush1.msra.mxu0 0.0
    %862 = vmatprep.subr.mxu0 0.0
    %863 = vmatpush1.msra.mxu0 0.0
    %864 = vmatprep.subr.mxu0 0.0
    %865 = vmatpush1.msra.mxu0 0.0
    %866 = vmatprep.subr.mxu0 0.0
    %867 = vmatpush1.msra.mxu0 0.0
    %868 = vmatprep.subr.mxu0 0.0
    %869 = vmatpush1.msra.mxu0 0.0
    %870 = vmatprep.subr.mxu0 0.0
    %871 = vmatpush1.msra.mxu0 0.0
    %872 = vmatprep.subr.mxu0 0.0
    %873 = vmatpush1.msra.mxu0 0.0
    %874 = vmatprep.subr.mxu0 0.0
    %875 = vmatpush1.msra.mxu0 0.0
    %876 = vmatprep.subr.mxu0 0.0
    %877 = vmatpush1.msra.mxu0 0.0
    %878 = vmatprep.subr.mxu0 0.0
    %879 = vmatpush1.msra.mxu0 0.0
    %880 = vmatprep.subr.mxu0 0.0
    %881 = vmatpush1.msra.mxu0 0.0
    %882 = vmatprep.subr.mxu0 0.0
    %883 = vmatpush1.msra.mxu0 0.0
    %884 = vmatprep.mubr.f32.mxu0 0.0
    %v885 = vand.u32 %v352, 4294901760
    %886 = vmatmul.mubr.f32.gmra.mrb[0].mxu0 %v885
    %v887 = vpop.f32.mrb[0].mxu0
    %v888 = vadd.f32 %v809, %v887
    %v889 = vpop.f32.mrb[0].mxu0
    %890 = vdwg.mxu0
    %v891 = vmul.f32 %v888, %v888
    %893 = vrot.lane.b32.xlu0 %v891, 32
    %v894 = vpop.permute.xlu0 %893
    %v896 = vsub.f32 %v888, %v894
    %v897 = vld [vmem:[%s7] sm:$0x1]
    %v898 = vadd.f32 %v896, 1e-05
    %v899 = vrsqrt.pop %v898
    %v901 = vlaneseq
    %v902 = vshrl.u32 %v901, 7
    %v903 = vsub.s32 0, %v902
    %v904 = vrot.slane %v897, %v903
    %907 = vrot.lane.b32.xlu0 %v899, 96
    %v908 = vpop.permute.xlu0 %907
    %v910 = vmul.f32 %v904, %v908
    %v911 = vsub.f32 %v332, %v888
    %v912 = vmul.f32 %v911, %v910
    %v913 = vld [vmem:[%s8] sm:$0x1]
    %v915 = vlaneseq
    %v916 = vshrl.u32 %v915, 7
    %v917 = vsub.s32 0, %v916
    %v918 = vrot.slane %v913, %v917
    %v920 = vadd.f32 %v912, %v918
    %v921 = vmax.f32 %v920, 0.0
    %v922 = vpack.c.bf16 %v921, %v921
    %v923 = vld [vmem:[#allocation8] sm:$0xf]
    %v924 = vld [vmem:[#allocation8 + $0x4] sm:$0xf]
    %v925 = vld [vmem:[#allocation8 + $0x8] sm:$0xf]
    %v926 = vld [vmem:[#allocation8 + $0xc] sm:$0xf]
    %v927 = vld [vmem:[%s11] sm:$0x1]
    %v929 = vlaneseq
    %v930 = vshrl.u32 %v929, 7
    %v931 = vsub.s32 0, %v930
    %v932 = vrot.slane %v927, %v931
    %v938 = vunpack.c.l.b16 %v923
    %v939 = vunpack.c.l.b16 %v924
    %v940 = vunpack.c.l.b16 %v925
    %v941 = vunpack.c.l.b16 %v926
    %v942 = vpack.c.b16 %v939, %v938
    %v943 = vpack.c.b16 %v941, %v940
    %v947 = vsel %vm126, %v922, 0
    %949 = vmatprep.subr.bf16.mxu0 0
    %950 = vmatpush1.bf16.msra.mxu0 %v942
    %951 = vmatprep.subr.bf16.mxu0 0
    %952 = vmatpush1.bf16.msra.mxu0 %v943
    %953 = vmatprep.subr.bf16.mxu0 0
    %954 = vmatpush1.bf16.msra.mxu0 0
    %955 = vmatprep.subr.bf16.mxu0 0
    %956 = vmatpush1.bf16.msra.mxu0 0
    %957 = vmatprep.subr.bf16.mxu0 0
    %958 = vmatpush1.bf16.msra.mxu0 0
    %959 = vmatprep.subr.bf16.mxu0 0
    %960 = vmatpush1.bf16.msra.mxu0 0
    %961 = vmatprep.subr.bf16.mxu0 0
    %962 = vmatpush1.bf16.msra.mxu0 0
    %963 = vmatprep.subr.bf16.mxu0 0
    %964 = vmatpush1.bf16.msra.mxu0 0
    %965 = vmatprep.subr.bf16.mxu0 0
    %966 = vmatpush1.bf16.msra.mxu0 0
    %967 = vmatprep.subr.bf16.mxu0 0
    %968 = vmatpush1.bf16.msra.mxu0 0
    %969 = vmatprep.subr.bf16.mxu0 0
    %970 = vmatpush1.bf16.msra.mxu0 0
    %971 = vmatprep.subr.bf16.mxu0 0
    %972 = vmatpush1.bf16.msra.mxu0 0
    %973 = vmatprep.subr.bf16.mxu0 0
    %974 = vmatpush1.bf16.msra.mxu0 0
    %975 = vmatprep.subr.bf16.mxu0 0
    %976 = vmatpush1.bf16.msra.mxu0 0
    %977 = vmatprep.subr.bf16.mxu0 0
    %978 = vmatpush1.bf16.msra.mxu0 0
    %979 = vmatprep.subr.bf16.mxu0 0
    %980 = vmatpush1.bf16.msra.mxu0 0
    %981 = vmatprep.mubr.bf16.mxu0 0
    %982 = vmatmul.mubr.bf16.gmra.mrb[0].mxu0 %v947
    %v983 = vpop.f32.mrb[0].mxu0
    %v984 = vadd.f32 %v932, %v983
    %v985 = vpop.f32.mrb[0].mxu0
    %v986 = vpop.f32.mrb[0].mxu0
    %v987 = vpop.f32.mrb[0].mxu0
    %988 = vdwg.mxu0
    %v989 = vmax.f32 %v984, 0.0
    %v990 = vpack.c.bf16 %v989, %v989
    %v991 = vld [vmem:[%s12] sm:$0xf]
    %v992 = vld [vmem:[%s12 + $0x4] sm:$0xf]
    %v993 = vld [vmem:[%s12 + $0x8] sm:$0xf]
    %v994 = vld [vmem:[%s12 + $0xc] sm:$0xf]
    %v995 = vld [vmem:[%s13] sm:$0x1]
    %v997 = vlaneseq
    %v998 = vshrl.u32 %v997, 7
    %v999 = vsub.s32 0, %v998
    %v1000 = vrot.slane %v995, %v999
    %v1006 = vunpack.c.l.b16 %v991
    %v1007 = vunpack.c.l.b16 %v992
    %v1008 = vunpack.c.l.b16 %v993
    %v1009 = vunpack.c.l.b16 %v994
    %v1010 = vpack.c.b16 %v1007, %v1006
    %v1011 = vpack.c.b16 %v1009, %v1008
    %v1015 = vsel %vm126, %v990, 0
    %1017 = vmatprep.subr.bf16.mxu0 0
    %1018 = vmatpush1.bf16.msra.mxu0 %v1010
    %1019 = vmatprep.subr.bf16.mxu0 0
    %1020 = vmatpush1.bf16.msra.mxu0 %v1011
    %1021 = vmatprep.subr.bf16.mxu0 0
    %1022 = vmatpush1.bf16.msra.mxu0 0
    %1023 = vmatprep.subr.bf16.mxu0 0
    %1024 = vmatpush1.bf16.msra.mxu0 0
    %1025 = vmatprep.subr.bf16.mxu0 0
    %1026 = vmatpush1.bf16.msra.mxu0 0
    %1027 = vmatprep.subr.bf16.mxu0 0
    %1028 = vmatpush1.bf16.msra.mxu0 0
    %1029 = vmatprep.subr.bf16.mxu0 0
    %1030 = vmatpush1.bf16.msra.mxu0 0
    %1031 = vmatprep.subr.bf16.mxu0 0
    %1032 = vmatpush1.bf16.msra.mxu0 0
    %1033 = vmatprep.subr.bf16.mxu0 0
    %1034 = vmatpush1.bf16.msra.mxu0 0
    %1035 = vmatprep.subr.bf16.mxu0 0
    %1036 = vmatpush1.bf16.msra.mxu0 0
    %1037 = vmatprep.subr.bf16.mxu0 0
    %1038 = vmatpush1.bf16.msra.mxu0 0
    %1039 = vmatprep.subr.bf16.mxu0 0
    %1040 = vmatpush1.bf16.msra.mxu0 0
    %1041 = vmatprep.subr.bf16.mxu0 0
    %1042 = vmatpush1.bf16.msra.mxu0 0
    %1043 = vmatprep.subr.bf16.mxu0 0
    %1044 = vmatpush1.bf16.msra.mxu0 0
    %1045 = vmatprep.subr.bf16.mxu0 0
    %1046 = vmatpush1.bf16.msra.mxu0 0
    %1047 = vmatprep.subr.bf16.mxu0 0
    %1048 = vmatpush1.bf16.msra.mxu0 0
    %1049 = vmatprep.mubr.bf16.mxu0 0
    %1050 = vmatmul.mubr.bf16.gmra.mrb[0].mxu0 %v1015
    %v1051 = vpop.f32.mrb[0].mxu0
    %v1052 = vadd.f32 %v1000, %v1051
    %v1053 = vpop.f32.mrb[0].mxu0
    %v1054 = vpop.f32.mrb[0].mxu0
    %v1055 = vpop.f32.mrb[0].mxu0
    %1056 = vdwg.mxu0
    %v1057 = vmax.f32 %v1052, 0.0
    %vm1058 = vcmask 64512
    %1059 = vst.msk [vmem:[#allocation10] sm:$0xff] %vm1058, %v1057
    // Predicated region
    $region74: #{tpu_custom_call.1} parent=1 // pred_check
      _
    $region75: #{tpu_custom_call.1} parent=1 // pred_check_branch
      %1061 = sbr.rel (0) target = $region77
    $region76: #{tpu_custom_call.1} parent=1 // pred_region
      %s1063 = ssub.s32 128, 128
      %1064 = vsyncadd [#allocation4], %s1063
      %s1066 = sshll.u32 [#allocation10], 4
      %s1067 = int_to_ptr.vmem [resolvable:$true] %s1066
      %1069 = dma.vmem_to_hbm [thread:$0]  %s1067, 128, %s14, [#allocation4]
    $region77: #{tpu_custom_call.1} parent=1 // pred_fallthru
      _
    // Predicated region
    $region78: #{tpu_custom_call.1} parent=1 // pred_check
      _
    $region79: #{tpu_custom_call.1} parent=1 // pred_check_branch
      %1071 = sbr.rel (0) target = $region81
    $region80: #{tpu_custom_call.1} parent=1 // pred_region
      %1072 = dma.done [#allocation4], 128
    $region81: #{tpu_custom_call.1} parent=1 // pred_fallthru
      _
    %1073 = vsyncpa [#allocation3], 1
    %1074 = vsyncpa [#allocation6], 1
    %1075 = vsyncpa [#allocation9], 1
    %1076 = vsyncpa [#allocation4], 1

</llo_original>
